<compile_context>
chip_gen: v7x
topology: tpu7x:2x2x1
jax: 0.10.0
libtpu: 0.0.40
codegen_flags: <defaults>
</compile_context>

<pallas_src>
import numpy as np
import jax
import jax.numpy as jnp
from jax.experimental import pallas as pl
from jax.experimental.pallas import tpu as pltpu


def _interp_matrix_np(in_size: int, out_size: int) -> np.ndarray:
    """PyTorch bilinear (align_corners=False) interpolation matrix (out, in)."""
    scale = in_size / out_size
    dst = np.arange(out_size, dtype=np.float64)
    src = np.maximum((dst + 0.5) * scale - 0.5, 0.0)   # PyTorch clamps negatives
    i0 = np.minimum(np.floor(src).astype(np.int64), in_size - 1)
    i1 = np.minimum(i0 + 1, in_size - 1)
    frac = src - i0
    A = np.zeros((out_size, in_size), dtype=np.float64)
    rows = np.arange(out_size)
    np.add.at(A, (rows, i0), 1.0 - frac)
    np.add.at(A, (rows, i1), frac)
    return A.astype(np.float32)


def _kron_kernel(x_ref, m_ref, kt_ref, ox_ref, om_ref):
    # x_ref, m_ref: (TB, H*W) ; kt_ref: (H*W, Hout*Wout) ; outputs: (TB, Hout*Wout)
    tb = x_ref.shape[0]
    x = x_ref[...]
    m = m_ref[...]
    # Fuse x- and m-upsample into one MXU matmul.
    y = jnp.concatenate([x * m, m], axis=0)                       # (2*TB, H*W)
    up = jnp.dot(y, kt_ref[...], preferred_element_type=jnp.float32)
    up_x = up[:tb]
    up_m = up[tb:]
    # m >= 0 and interpolation weights >= 0, so up_m >= 0 (the >0 test is exact).
    mc = pl.reciprocal(jnp.maximum(up_m, 1e-5), approx=True)      # EUP slot
    ox_ref[...] = up_x * mc
    om_ref[...] = (up_m > 0.0).astype(jnp.float32)


def _separable_kernel(x_ref, m_ref, ah_ref, awt_ref, ox_ref, om_ref):
    # Fallback for large spatial sizes.
    # x_ref, m_ref: (TB, H, W) ; ah_ref: (Hout, H) ; awt_ref: (W, Wout)
    tb = x_ref.shape[0]
    y = jnp.concatenate([x_ref[...] * m_ref[...], m_ref[...]], axis=0)  # (2TB,H,W)
    t = jnp.einsum('bhw,wv->bhv', y, awt_ref[...],
                   preferred_element_type=jnp.float32)
    up = jnp.einsum('oh,bhv->bov', ah_ref[...], t,
                    preferred_element_type=jnp.float32)
    up_x = up[:tb]
    up_m = up[tb:]
    mc = pl.reciprocal(jnp.maximum(up_m, 1e-5), approx=True)
    ox_ref[...] = up_x * mc
    om_ref[...] = (up_m > 0.0).astype(jnp.float32)


def _round_up(a: int, b: int) -> int:
    return ((a + b - 1) // b) * b


_KRON_BYTES_LIMIT = 4 * 1024 * 1024    # use flattened matmul while K^T <= 4 MiB
_ROW_BUDGET_BYTES = 6 * 1024 * 1024    # target HBM traffic per grid step


def sparse_upsample(x: jnp.ndarray, m: jnp.ndarray, scale_factor: int = 2):
    """x, m: (N, C, H, W) float32.  Returns (x_up, m_up): (N, C, sH, sW)."""
    N, C, H, W = x.shape
    Hout, Wout = H * scale_factor, W * scale_factor
    HW, HWout = H * W, Hout * Wout

    ah = _interp_matrix_np(H, Hout)            # (Hout, H)
    aw = _interp_matrix_np(W, Wout)            # (Wout, W)

    B = N * C
    # Batch-tile size: a few MiB of in+out traffic per step, multiple of 8,
    # and small enough that double-buffering fits VMEM on v5e/v6e/v7x.
    row_bytes = 4 * (2 * HW + 2 * HWout)       # per batch row: 2 inputs + 2 outputs
    tb = max(8, min(1024, (_ROW_BUDGET_BYTES // row_bytes) // 8 * 8))
    tb = min(tb, _round_up(B, 8))
    Bp = _round_up(B, tb)

    xb = x.reshape(B, HW).astype(jnp.float32)
    mb = m.reshape(B, HW).astype(jnp.float32)
    if Bp != B:
        pad = ((0, Bp - B), (0, 0))
        xb = jnp.pad(xb, pad)                  # zero rows -> ox = 0, om = 0 (harmless)
        mb = jnp.pad(mb, pad)

    grid = (Bp // tb,)
    cparams = pltpu.CompilerParams(
        dimension_semantics=("parallel",),
        vmem_limit_bytes=48 * 1024 * 1024,
    )

    if HW * HWout * 4 <= _KRON_BYTES_LIMIT:
        # Lane-dense flattened path: (TB, H*W) @ kron(A_h, A_w)^T.
        kt = jnp.asarray(np.kron(ah, aw).T)    # (H*W, Hout*Wout)
        out_x, out_m = pl.pallas_call(
            _kron_kernel,
            out_shape=(
                jax.ShapeDtypeStruct((Bp, HWout), jnp.float32),
                jax.ShapeDtypeStruct((Bp, HWout), jnp.float32),
            ),
            grid=grid,
            in_specs=[
                pl.BlockSpec((tb, HW), lambda b: (b, 0)),
                pl.BlockSpec((tb, HW), lambda b: (b, 0)),
                pl.BlockSpec((HW, HWout), lambda b: (0, 0)),   # grid-invariant
            ],
            out_specs=(
                pl.BlockSpec((tb, HWout), lambda b: (b, 0)),
                pl.BlockSpec((tb, HWout), lambda b: (b, 0)),
            ),
            compiler_params=cparams,
        )(xb, mb, kt)
    else:
        # Separable fallback for large spatial sizes (K^T would be too big).
        xb3 = xb.reshape(Bp, H, W)
        mb3 = mb.reshape(Bp, H, W)
        out_x, out_m = pl.pallas_call(
            _separable_kernel,
            out_shape=(
                jax.ShapeDtypeStruct((Bp, Hout, Wout), jnp.float32),
                jax.ShapeDtypeStruct((Bp, Hout, Wout), jnp.float32),
            ),
            grid=grid,
            in_specs=[
                pl.BlockSpec((tb, H, W), lambda b: (b, 0, 0)),
                pl.BlockSpec((tb, H, W), lambda b: (b, 0, 0)),
                pl.BlockSpec((Hout, H), lambda b: (0, 0)),
                pl.BlockSpec((W, Wout), lambda b: (0, 0)),
            ],
            out_specs=(
                pl.BlockSpec((tb, Hout, Wout), lambda b: (b, 0, 0)),
                pl.BlockSpec((tb, Hout, Wout), lambda b: (b, 0, 0)),
            ),
            compiler_params=cparams,
        )(xb3, mb3, jnp.asarray(ah), jnp.asarray(aw.T))

    out_x = out_x[:B].reshape(N, C, Hout, Wout)
    out_m = out_m[:B].reshape(N, C, Hout, Wout)
    return out_x, out_m


if __name__ == "__main__":
    key = jax.random.PRNGKey(0)
    kx, km = jax.random.split(key)

    N, C, H, W = 2, 4, 16, 16
    x = jax.random.normal(kx, (N, C, H, W), dtype=jnp.float32)
    # Sparse binary mask (m >= 0, as the module assumes).
    m = (jax.random.uniform(km, (N, C, H, W)) > 0.5).astype(jnp.float32)

    x_up, m_up = sparse_upsample(x, m, scale_factor=2)
    jax.block_until_ready((x_up, m_up))

    Hout, Wout = 2 * H, 2 * W
    assert x_up.shape == (N, C, Hout, Wout)
    assert m_up.shape == (N, C, Hout, Wout)

    # Pure-JAX reference (same interpolation matrices, exact f32 divide).
    ah_j = jnp.asarray(_interp_matrix_np(H, Hout))   # (Hout, H)
    aw_j = jnp.asarray(_interp_matrix_np(W, Wout))   # (Wout, W)
    hp = jax.lax.Precision.HIGHEST
    up_x_ref = jnp.einsum('oh,nchw,vw->ncov', ah_j, x * m, aw_j, precision=hp)
    up_m_ref = jnp.einsum('oh,nchw,vw->ncov', ah_j, m, aw_j, precision=hp)
    x_ref_out = up_x_ref * (1.0 / jnp.maximum(up_m_ref, 1e-5))
    m_ref_out = (up_m_ref > 0.0).astype(jnp.float32)

    np.testing.assert_array_equal(np.asarray(m_up), np.asarray(m_ref_out))
    # Loose tolerance: MXU default precision + approx reciprocal in the kernel.
    np.testing.assert_allclose(np.asarray(x_up), np.asarray(x_ref_out),
                               rtol=3e-2, atol=3e-2)
    print("KERNEL_OK")
</pallas_src>

<mosaic_0001>
module attributes {stable_mosaic.version = 11 : i64} {
  func.func @_kron_kernel(%arg0: i32, %arg1: memref<8x256xf32, #tpu.memory_space<vmem>>, %arg2: memref<8x256xf32, #tpu.memory_space<vmem>>, %arg3: memref<256x1024xf32, #tpu.memory_space<vmem>>, %arg4: memref<8x1024xf32, #tpu.memory_space<vmem>>, %arg5: memref<8x1024xf32, #tpu.memory_space<vmem>>) attributes {dimension_semantics = [#tpu.dimension_semantics<parallel>], iteration_bounds = array<i64: 1>, scalar_prefetch = 0 : i64, scratch_operands = 0 : i64, tpu.core_type = #tpu.core_type<tc>, window_params = [{transform_indices = @transform_0, window_bounds = array<i64: 8, 256>}, {transform_indices = @transform_1, window_bounds = array<i64: 8, 256>}, {pipeline_mode = #tpu.pipeline_mode<synchronous>, transform_indices = @transform_2, window_bounds = array<i64: 256, 1024>}, {transform_indices = @transform_3, window_bounds = array<i64: 8, 1024>}, {transform_indices = @transform_4, window_bounds = array<i64: 8, 1024>}]} {
    %c0 = arith.constant 0 : index
    %c0_0 = arith.constant 0 : index
    %0 = vector.load %arg1[%c0, %c0_0] : memref<8x256xf32, #tpu.memory_space<vmem>>, vector<8x256xf32>
    %c0_1 = arith.constant 0 : index
    %c0_2 = arith.constant 0 : index
    %1 = vector.load %arg2[%c0_1, %c0_2] : memref<8x256xf32, #tpu.memory_space<vmem>>, vector<8x256xf32>
    %2 = arith.mulf %0, %1 : vector<8x256xf32>
    %3 = tpu.concatenate %2, %1 in 0 : vector<8x256xf32>, vector<8x256xf32> -> vector<16x256xf32>
    %c0_3 = arith.constant 0 : index
    %c0_4 = arith.constant 0 : index
    %4 = vector.load %arg3[%c0_3, %c0_4] : memref<256x1024xf32, #tpu.memory_space<vmem>>, vector<256x1024xf32>
    %cst = arith.constant dense<0.000000e+00> : vector<16x1024xf32>
    %5 = tpu.matmul %3, %4, %cst {dimension_numbers = #tpu.dot_dimension_numbers<[1], [0], [0], [1], [0, 0, 1, 1], [], []>} : vector<16x256xf32>, vector<256x1024xf32>, vector<16x1024xf32> -> vector<16x1024xf32>
    %6 = vector.extract_strided_slice %5 {offsets = [0, 0], sizes = [8, 1024], strides = [1, 1]} : vector<16x1024xf32> to vector<8x1024xf32>
    %7 = vector.extract_strided_slice %5 {offsets = [8, 0], sizes = [8, 1024], strides = [1, 1]} : vector<16x1024xf32> to vector<8x1024xf32>
    %cst_5 = arith.constant 9.99999974E-6 : f32
    %8 = vector.broadcast %cst_5 : f32 to vector<8x1024xf32>
    %9 = arith.maximumf %7, %8 : vector<8x1024xf32>
    %10 = tpu.reciprocal %9 {approx = true} : vector<8x1024xf32> -> vector<8x1024xf32>
    %11 = arith.mulf %6, %10 : vector<8x1024xf32>
    %c0_6 = arith.constant 0 : index
    %c0_7 = arith.constant 0 : index
    %12 = vector.load %arg4[%c0_6, %c0_7] : memref<8x1024xf32, #tpu.memory_space<vmem>>, vector<8x1024xf32>
    tpu.vector_store %arg4[%c0_6, %c0_7], %11 {strides = array<i32>} : memref<8x1024xf32, #tpu.memory_space<vmem>>, vector<8x1024xf32>,
    %cst_8 = arith.constant 0.000000e+00 : f32
    %13 = vector.broadcast %cst_8 : f32 to vector<8x1024xf32>
    %14 = arith.cmpf ogt, %7, %13 : vector<8x1024xf32>
    %15 = arith.extui %14 : vector<8x1024xi1> to vector<8x1024xi32>
    %16 = arith.sitofp %15 : vector<8x1024xi32> to vector<8x1024xf32>
    %c0_9 = arith.constant 0 : index
    %c0_10 = arith.constant 0 : index
    %17 = vector.load %arg5[%c0_9, %c0_10] : memref<8x1024xf32, #tpu.memory_space<vmem>>, vector<8x1024xf32>
    tpu.vector_store %arg5[%c0_9, %c0_10], %16 {strides = array<i32>} : memref<8x1024xf32, #tpu.memory_space<vmem>>, vector<8x1024xf32>,
    return
  }
  func.func @transform_0(%arg0: i32) -> (i32, i32) {
    %c0_i32 = arith.constant 0 : i32
    %c0_i32_0 = arith.constant 0 : i32
    return %arg0, %c0_i32 : i32, i32
  }
  func.func @transform_1(%arg0: i32) -> (i32, i32) {
    %c0_i32 = arith.constant 0 : i32
    %c0_i32_0 = arith.constant 0 : i32
    return %arg0, %c0_i32 : i32, i32
  }
  func.func @transform_2(%arg0: i32) -> (i32, i32) {
    %c0_i32 = arith.constant 0 : i32
    %c0_i32_0 = arith.constant 0 : i32
    %c0_i32_1 = arith.constant 0 : i32
    return %c0_i32, %c0_i32_0 : i32, i32
  }
  func.func @transform_3(%arg0: i32) -> (i32, i32) {
    %c0_i32 = arith.constant 0 : i32
    %c0_i32_0 = arith.constant 0 : i32
    return %arg0, %c0_i32 : i32, i32
  }
  func.func @transform_4(%arg0: i32) -> (i32, i32) {
    %c0_i32 = arith.constant 0 : i32
    %c0_i32_0 = arith.constant 0 : i32
    return %arg0, %c0_i32 : i32, i32
  }
}

</mosaic_0001>

<llo_original>
// kernel: tpu_custom_call.1
$region0: #{tpu_custom_call.1}
  #allocation0 [shape = 'u32[]', space=smem, size = 0x4, offset = 0x4, fixed_abs, tag = 'smem constant byte address 0x4 - core index']
  #allocation1 [shape = 'u32[144,128]{1,0:T(1,128)}', space=vmem, size = 0x12000, scoped, tag = 'internal scratch']
  %s0 = inlined_call_operand.hbm [shape: f32[8,256], index: 0, kind: input, shape index: {}]
  %s1 = inlined_call_operand.hbm [shape: f32[8,256], index: 1, kind: input, shape index: {}]
  %s2 = inlined_call_operand.hbm [shape: f32[256,1024], index: 2, kind: input, shape index: {}]
  %s3 = inlined_call_operand.hbm [shape: f32[8,1024], index: 3, kind: output, shape index: {0}]
  %s4 = inlined_call_operand.hbm [shape: f32[8,1024], index: 4, kind: output, shape index: {1}]
  %5 = xla_tuple %s3, %s4
  %s6 = sld [smem:[#allocation0]]
  $region42: #{tpu_custom_call.1} parent=0
    _
  %s8 = ssub.s32 1, %s6
  %s9 = scalar_select 0, %s8, %s6
  $region1: #{tpu_custom_call.1} parent=0
    #allocation2 [shape = 'u8[8192]{0}', space=vmem, size = 0x2000, scoped, tag = 'input window, operand 0, single buffered']
    #allocation3 [shape = 's32[1]{0}', space=sflag, size = 0x4, scoped, tag = 'scoped memory for tpu_custom_call.1']
    #allocation4 [shape = 's32[1]{0}', space=sflag, size = 0x4, scoped, tag = 'scoped memory for tpu_custom_call.1']
    #allocation5 [shape = 'u8[8192]{0}', space=vmem, size = 0x2000, scoped, tag = 'input window, operand 1, single buffered']
    #allocation6 [shape = 's32[1]{0}', space=sflag, size = 0x4, scoped, tag = 'scoped memory for tpu_custom_call.1']
    #allocation7 [shape = 'u8[1048576]{0}', space=vmem, size = 0x100000, scoped, tag = 'input window, operand 2, single buffered']
    #allocation8 [shape = 'u8[32768]{0}', space=vmem, size = 0x8000, scoped, tag = 'output window, operand 0, single buffered']
    #allocation9 [shape = 'u8[32768]{0}', space=vmem, size = 0x8000, scoped, tag = 'output window, operand 1, single buffered']
    #allocation10 [shape = 's32[1]{0}', space=sflag, size = 0x4, scoped, tag = 'scoped memory for tpu_custom_call.1']
    %10 = vsyncpa [#allocation3], 0
    %11 = vsyncpa [#allocation6], 0
    %12 = vsyncpa [#allocation4], 0
    %13 = vsyncpa [#allocation10], 0
    // Predicated region
    $region2: #{tpu_custom_call.1} parent=1 // pred_check
      _
    $region3: #{tpu_custom_call.1} parent=1 // pred_check_branch
      %15 = sbr.rel (0) target = $region5
    $region4: #{tpu_custom_call.1} parent=1 // pred_region
      %s17 = ssub.s32 256, 256
      %18 = vsyncadd [#allocation3], %s17
      %s20 = sshll.u32 [#allocation2], 4
      %s21 = int_to_ptr.vmem [resolvable:$true] %s20
      %23 = dma.hbm_to_vmem [thread:$0]  %s0, 256, %s21, [#allocation3]
    $region5: #{tpu_custom_call.1} parent=1 // pred_fallthru
      _
    // Predicated region
    $region6: #{tpu_custom_call.1} parent=1 // pred_check
      _
    $region7: #{tpu_custom_call.1} parent=1 // pred_check_branch
      %25 = sbr.rel (0) target = $region9
    $region8: #{tpu_custom_call.1} parent=1 // pred_region
      %s27 = ssub.s32 256, 256
      %28 = vsyncadd [#allocation6], %s27
      %s30 = sshll.u32 [#allocation5], 4
      %s31 = int_to_ptr.vmem [resolvable:$true] %s30
      %33 = dma.hbm_to_vmem [thread:$0]  %s1, 256, %s31, [#allocation6]
    $region9: #{tpu_custom_call.1} parent=1 // pred_fallthru
      _
    // Predicated region
    $region10: #{tpu_custom_call.1} parent=1 // pred_check
      _
    $region11: #{tpu_custom_call.1} parent=1 // pred_check_branch
      %35 = sbr.rel (0) target = $region13
    $region12: #{tpu_custom_call.1} parent=1 // pred_region
      %s37 = ssub.s32 32768, 32768
      %38 = vsyncadd [#allocation6], %s37
      %s39 = sshll.u32 [#allocation7], 4
      %s40 = int_to_ptr.vmem [resolvable:$true] %s39
      %45 = dma.hbm_to_vmem [thread:$0]  %s2, 32768, %s40, [#allocation6], 1024, 1024, 64
    $region13: #{tpu_custom_call.1} parent=1 // pred_fallthru
      _
    // Predicated region
    $region14: #{tpu_custom_call.1} parent=1 // pred_check
      _
    $region15: #{tpu_custom_call.1} parent=1 // pred_check_branch
      %47 = sbr.rel (0) target = $region17
    $region16: #{tpu_custom_call.1} parent=1 // pred_region
      %48 = dma.done [#allocation3], 256
    $region17: #{tpu_custom_call.1} parent=1 // pred_fallthru
      _
    // Predicated region
    $region18: #{tpu_custom_call.1} parent=1 // pred_check
      _
    $region19: #{tpu_custom_call.1} parent=1 // pred_check_branch
      %50 = sbr.rel (0) target = $region21
    $region20: #{tpu_custom_call.1} parent=1 // pred_region
      %51 = dma.done [#allocation6], 256
    $region21: #{tpu_custom_call.1} parent=1 // pred_fallthru
      _
    // Predicated region
    $region22: #{tpu_custom_call.1} parent=1 // pred_check
      _
    $region23: #{tpu_custom_call.1} parent=1 // pred_check_branch
      %53 = sbr.rel (0) target = $region25
    $region24: #{tpu_custom_call.1} parent=1 // pred_region
      %54 = dma.done [#allocation6], 32768
    $region25: #{tpu_custom_call.1} parent=1 // pred_fallthru
      _
    %v55 = vld [vmem:[#allocation2] sm:$0xff]
    %v56 = vld [vmem:[#allocation2 + $0x8] sm:$0xff]
    %v57 = vld [vmem:[#allocation5] sm:$0xff]
    %v58 = vld [vmem:[#allocation5 + $0x8] sm:$0xff]
    %v59 = vmul.f32 %v55, %v57
    %v60 = vmul.f32 %v56, %v58
    %v61 = vld [vmem:[#allocation7] sm:$0xff]
    %v62 = vld [vmem:[#allocation7 + $0x8] sm:$0xff]
    %v63 = vld [vmem:[#allocation7 + $0x10] sm:$0xff]
    %v64 = vld [vmem:[#allocation7 + $0x18] sm:$0xff]
    %v65 = vld [vmem:[#allocation7 + $0x20] sm:$0xff]
    %v66 = vld [vmem:[#allocation7 + $0x28] sm:$0xff]
    %v67 = vld [vmem:[#allocation7 + $0x30] sm:$0xff]
    %v68 = vld [vmem:[#allocation7 + $0x38] sm:$0xff]
    %v69 = vld [vmem:[#allocation7 + $0x40] sm:$0xff]
    %v70 = vld [vmem:[#allocation7 + $0x48] sm:$0xff]
    %v71 = vld [vmem:[#allocation7 + $0x50] sm:$0xff]
    %v72 = vld [vmem:[#allocation7 + $0x58] sm:$0xff]
    %v73 = vld [vmem:[#allocation7 + $0x60] sm:$0xff]
    %v74 = vld [vmem:[#allocation7 + $0x68] sm:$0xff]
    %v75 = vld [vmem:[#allocation7 + $0x70] sm:$0xff]
    %v76 = vld [vmem:[#allocation7 + $0x78] sm:$0xff]
    %v77 = vld [vmem:[#allocation7 + $0x80] sm:$0xff]
    %v78 = vld [vmem:[#allocation7 + $0x88] sm:$0xff]
    %v79 = vld [vmem:[#allocation7 + $0x90] sm:$0xff]
    %v80 = vld [vmem:[#allocation7 + $0x98] sm:$0xff]
    %v81 = vld [vmem:[#allocation7 + $0xa0] sm:$0xff]
    %v82 = vld [vmem:[#allocation7 + $0xa8] sm:$0xff]
    %v83 = vld [vmem:[#allocation7 + $0xb0] sm:$0xff]
    %v84 = vld [vmem:[#allocation7 + $0xb8] sm:$0xff]
    %v85 = vld [vmem:[#allocation7 + $0xc0] sm:$0xff]
    %v86 = vld [vmem:[#allocation7 + $0xc8] sm:$0xff]
    %v87 = vld [vmem:[#allocation7 + $0xd0] sm:$0xff]
    %v88 = vld [vmem:[#allocation7 + $0xd8] sm:$0xff]
    %v89 = vld [vmem:[#allocation7 + $0xe0] sm:$0xff]
    %v90 = vld [vmem:[#allocation7 + $0xe8] sm:$0xff]
    %v91 = vld [vmem:[#allocation7 + $0xf0] sm:$0xff]
    %v92 = vld [vmem:[#allocation7 + $0xf8] sm:$0xff]
    %v93 = vld [vmem:[#allocation7 + $0x100] sm:$0xff]
    %v94 = vld [vmem:[#allocation7 + $0x108] sm:$0xff]
    %v95 = vld [vmem:[#allocation7 + $0x110] sm:$0xff]
    %v96 = vld [vmem:[#allocation7 + $0x118] sm:$0xff]
    %v97 = vld [vmem:[#allocation7 + $0x120] sm:$0xff]
    %v98 = vld [vmem:[#allocation7 + $0x128] sm:$0xff]
    %v99 = vld [vmem:[#allocation7 + $0x130] sm:$0xff]
    %v100 = vld [vmem:[#allocation7 + $0x138] sm:$0xff]
    %v101 = vld [vmem:[#allocation7 + $0x140] sm:$0xff]
    %v102 = vld [vmem:[#allocation7 + $0x148] sm:$0xff]
    %v103 = vld [vmem:[#allocation7 + $0x150] sm:$0xff]
    %v104 = vld [vmem:[#allocation7 + $0x158] sm:$0xff]
    %v105 = vld [vmem:[#allocation7 + $0x160] sm:$0xff]
    %v106 = vld [vmem:[#allocation7 + $0x168] sm:$0xff]
    %v107 = vld [vmem:[#allocation7 + $0x170] sm:$0xff]
    %v108 = vld [vmem:[#allocation7 + $0x178] sm:$0xff]
    %v109 = vld [vmem:[#allocation7 + $0x180] sm:$0xff]
    %v110 = vld [vmem:[#allocation7 + $0x188] sm:$0xff]
    %v111 = vld [vmem:[#allocation7 + $0x190] sm:$0xff]
    %v112 = vld [vmem:[#allocation7 + $0x198] sm:$0xff]
    %v113 = vld [vmem:[#allocation7 + $0x1a0] sm:$0xff]
    %v114 = vld [vmem:[#allocation7 + $0x1a8] sm:$0xff]
    %v115 = vld [vmem:[#allocation7 + $0x1b0] sm:$0xff]
    %v116 = vld [vmem:[#allocation7 + $0x1b8] sm:$0xff]
    %v117 = vld [vmem:[#allocation7 + $0x1c0] sm:$0xff]
    %v118 = vld [vmem:[#allocation7 + $0x1c8] sm:$0xff]
    %v119 = vld [vmem:[#allocation7 + $0x1d0] sm:$0xff]
    %v120 = vld [vmem:[#allocation7 + $0x1d8] sm:$0xff]
    %v121 = vld [vmem:[#allocation7 + $0x1e0] sm:$0xff]
    %v122 = vld [vmem:[#allocation7 + $0x1e8] sm:$0xff]
    %v123 = vld [vmem:[#allocation7 + $0x1f0] sm:$0xff]
    %v124 = vld [vmem:[#allocation7 + $0x1f8] sm:$0xff]
    %v125 = vld [vmem:[#allocation7 + $0x200] sm:$0xff]
    %v126 = vld [vmem:[#allocation7 + $0x208] sm:$0xff]
    %v127 = vld [vmem:[#allocation7 + $0x210] sm:$0xff]
    %v128 = vld [vmem:[#allocation7 + $0x218] sm:$0xff]
    %v129 = vld [vmem:[#allocation7 + $0x220] sm:$0xff]
    %v130 = vld [vmem:[#allocation7 + $0x228] sm:$0xff]
    %v131 = vld [vmem:[#allocation7 + $0x230] sm:$0xff]
    %v132 = vld [vmem:[#allocation7 + $0x238] sm:$0xff]
    %v133 = vld [vmem:[#allocation7 + $0x240] sm:$0xff]
    %v134 = vld [vmem:[#allocation7 + $0x248] sm:$0xff]
    %v135 = vld [vmem:[#allocation7 + $0x250] sm:$0xff]
    %v136 = vld [vmem:[#allocation7 + $0x258] sm:$0xff]
    %v137 = vld [vmem:[#allocation7 + $0x260] sm:$0xff]
    %v138 = vld [vmem:[#allocation7 + $0x268] sm:$0xff]
    %v139 = vld [vmem:[#allocation7 + $0x270] sm:$0xff]
    %v140 = vld [vmem:[#allocation7 + $0x278] sm:$0xff]
    %v141 = vld [vmem:[#allocation7 + $0x280] sm:$0xff]
    %v142 = vld [vmem:[#allocation7 + $0x288] sm:$0xff]
    %v143 = vld [vmem:[#allocation7 + $0x290] sm:$0xff]
    %v144 = vld [vmem:[#allocation7 + $0x298] sm:$0xff]
    %v145 = vld [vmem:[#allocation7 + $0x2a0] sm:$0xff]
    %v146 = vld [vmem:[#allocation7 + $0x2a8] sm:$0xff]
    %v147 = vld [vmem:[#allocation7 + $0x2b0] sm:$0xff]
    %v148 = vld [vmem:[#allocation7 + $0x2b8] sm:$0xff]
    %v149 = vld [vmem:[#allocation7 + $0x2c0] sm:$0xff]
    %v150 = vld [vmem:[#allocation7 + $0x2c8] sm:$0xff]
    %v151 = vld [vmem:[#allocation7 + $0x2d0] sm:$0xff]
    %v152 = vld [vmem:[#allocation7 + $0x2d8] sm:$0xff]
    %v153 = vld [vmem:[#allocation7 + $0x2e0] sm:$0xff]
    %v154 = vld [vmem:[#allocation7 + $0x2e8] sm:$0xff]
    %v155 = vld [vmem:[#allocation7 + $0x2f0] sm:$0xff]
    %v156 = vld [vmem:[#allocation7 + $0x2f8] sm:$0xff]
    %v157 = vld [vmem:[#allocation7 + $0x300] sm:$0xff]
    %v158 = vld [vmem:[#allocation7 + $0x308] sm:$0xff]
    %v159 = vld [vmem:[#allocation7 + $0x310] sm:$0xff]
    %v160 = vld [vmem:[#allocation7 + $0x318] sm:$0xff]
    %v161 = vld [vmem:[#allocation7 + $0x320] sm:$0xff]
    %v162 = vld [vmem:[#allocation7 + $0x328] sm:$0xff]
    %v163 = vld [vmem:[#allocation7 + $0x330] sm:$0xff]
    %v164 = vld [vmem:[#allocation7 + $0x338] sm:$0xff]
    %v165 = vld [vmem:[#allocation7 + $0x340] sm:$0xff]
    %v166 = vld [vmem:[#allocation7 + $0x348] sm:$0xff]
    %v167 = vld [vmem:[#allocation7 + $0x350] sm:$0xff]
    %v168 = vld [vmem:[#allocation7 + $0x358] sm:$0xff]
    %v169 = vld [vmem:[#allocation7 + $0x360] sm:$0xff]
    %v170 = vld [vmem:[#allocation7 + $0x368] sm:$0xff]
    %v171 = vld [vmem:[#allocation7 + $0x370] sm:$0xff]
    %v172 = vld [vmem:[#allocation7 + $0x378] sm:$0xff]
    %v173 = vld [vmem:[#allocation7 + $0x380] sm:$0xff]
    %v174 = vld [vmem:[#allocation7 + $0x388] sm:$0xff]
    %v175 = vld [vmem:[#allocation7 + $0x390] sm:$0xff]
    %v176 = vld [vmem:[#allocation7 + $0x398] sm:$0xff]
    %v177 = vld [vmem:[#allocation7 + $0x3a0] sm:$0xff]
    %v178 = vld [vmem:[#allocation7 + $0x3a8] sm:$0xff]
    %v179 = vld [vmem:[#allocation7 + $0x3b0] sm:$0xff]
    %v180 = vld [vmem:[#allocation7 + $0x3b8] sm:$0xff]
    %v181 = vld [vmem:[#allocation7 + $0x3c0] sm:$0xff]
    %v182 = vld [vmem:[#allocation7 + $0x3c8] sm:$0xff]
    %v183 = vld [vmem:[#allocation7 + $0x3d0] sm:$0xff]
    %v184 = vld [vmem:[#allocation7 + $0x3d8] sm:$0xff]
    %v185 = vld [vmem:[#allocation7 + $0x3e0] sm:$0xff]
    %v186 = vld [vmem:[#allocation7 + $0x3e8] sm:$0xff]
    %v187 = vld [vmem:[#allocation7 + $0x3f0] sm:$0xff]
    %v188 = vld [vmem:[#allocation7 + $0x3f8] sm:$0xff]
    %v189 = vld [vmem:[#allocation7 + $0x400] sm:$0xff]
    %v190 = vld [vmem:[#allocation7 + $0x408] sm:$0xff]
    %v191 = vld [vmem:[#allocation7 + $0x410] sm:$0xff]
    %v192 = vld [vmem:[#allocation7 + $0x418] sm:$0xff]
    %v193 = vld [vmem:[#allocation7 + $0x420] sm:$0xff]
    %v194 = vld [vmem:[#allocation7 + $0x428] sm:$0xff]
    %v195 = vld [vmem:[#allocation7 + $0x430] sm:$0xff]
    %v196 = vld [vmem:[#allocation7 + $0x438] sm:$0xff]
    %v197 = vld [vmem:[#allocation7 + $0x440] sm:$0xff]
    %v198 = vld [vmem:[#allocation7 + $0x448] sm:$0xff]
    %v199 = vld [vmem:[#allocation7 + $0x450] sm:$0xff]
    %v200 = vld [vmem:[#allocation7 + $0x458] sm:$0xff]
    %v201 = vld [vmem:[#allocation7 + $0x460] sm:$0xff]
    %v202 = vld [vmem:[#allocation7 + $0x468] sm:$0xff]
    %v203 = vld [vmem:[#allocation7 + $0x470] sm:$0xff]
    %v204 = vld [vmem:[#allocation7 + $0x478] sm:$0xff]
    %v205 = vld [vmem:[#allocation7 + $0x480] sm:$0xff]
    %v206 = vld [vmem:[#allocation7 + $0x488] sm:$0xff]
    %v207 = vld [vmem:[#allocation7 + $0x490] sm:$0xff]
    %v208 = vld [vmem:[#allocation7 + $0x498] sm:$0xff]
    %v209 = vld [vmem:[#allocation7 + $0x4a0] sm:$0xff]
    %v210 = vld [vmem:[#allocation7 + $0x4a8] sm:$0xff]
    %v211 = vld [vmem:[#allocation7 + $0x4b0] sm:$0xff]
    %v212 = vld [vmem:[#allocation7 + $0x4b8] sm:$0xff]
    %v213 = vld [vmem:[#allocation7 + $0x4c0] sm:$0xff]
    %v214 = vld [vmem:[#allocation7 + $0x4c8] sm:$0xff]
    %v215 = vld [vmem:[#allocation7 + $0x4d0] sm:$0xff]
    %v216 = vld [vmem:[#allocation7 + $0x4d8] sm:$0xff]
    %v217 = vld [vmem:[#allocation7 + $0x4e0] sm:$0xff]
    %v218 = vld [vmem:[#allocation7 + $0x4e8] sm:$0xff]
    %v219 = vld [vmem:[#allocation7 + $0x4f0] sm:$0xff]
    %v220 = vld [vmem:[#allocation7 + $0x4f8] sm:$0xff]
    %v221 = vld [vmem:[#allocation7 + $0x500] sm:$0xff]
    %v222 = vld [vmem:[#allocation7 + $0x508] sm:$0xff]
    %v223 = vld [vmem:[#allocation7 + $0x510] sm:$0xff]
    %v224 = vld [vmem:[#allocation7 + $0x518] sm:$0xff]
    %v225 = vld [vmem:[#allocation7 + $0x520] sm:$0xff]
    %v226 = vld [vmem:[#allocation7 + $0x528] sm:$0xff]
    %v227 = vld [vmem:[#allocation7 + $0x530] sm:$0xff]
    %v228 = vld [vmem:[#allocation7 + $0x538] sm:$0xff]
    %v229 = vld [vmem:[#allocation7 + $0x540] sm:$0xff]
    %v230 = vld [vmem:[#allocation7 + $0x548] sm:$0xff]
    %v231 = vld [vmem:[#allocation7 + $0x550] sm:$0xff]
    %v232 = vld [vmem:[#allocation7 + $0x558] sm:$0xff]
    %v233 = vld [vmem:[#allocation7 + $0x560] sm:$0xff]
    %v234 = vld [vmem:[#allocation7 + $0x568] sm:$0xff]
    %v235 = vld [vmem:[#allocation7 + $0x570] sm:$0xff]
    %v236 = vld [vmem:[#allocation7 + $0x578] sm:$0xff]
    %v237 = vld [vmem:[#allocation7 + $0x580] sm:$0xff]
    %v238 = vld [vmem:[#allocation7 + $0x588] sm:$0xff]
    %v239 = vld [vmem:[#allocation7 + $0x590] sm:$0xff]
    %v240 = vld [vmem:[#allocation7 + $0x598] sm:$0xff]
    %v241 = vld [vmem:[#allocation7 + $0x5a0] sm:$0xff]
    %v242 = vld [vmem:[#allocation7 + $0x5a8] sm:$0xff]
    %v243 = vld [vmem:[#allocation7 + $0x5b0] sm:$0xff]
    %v244 = vld [vmem:[#allocation7 + $0x5b8] sm:$0xff]
    %v245 = vld [vmem:[#allocation7 + $0x5c0] sm:$0xff]
    %v246 = vld [vmem:[#allocation7 + $0x5c8] sm:$0xff]
    %v247 = vld [vmem:[#allocation7 + $0x5d0] sm:$0xff]
    %v248 = vld [vmem:[#allocation7 + $0x5d8] sm:$0xff]
    %v249 = vld [vmem:[#allocation7 + $0x5e0] sm:$0xff]
    %v250 = vld [vmem:[#allocation7 + $0x5e8] sm:$0xff]
    %v251 = vld [vmem:[#allocation7 + $0x5f0] sm:$0xff]
    %v252 = vld [vmem:[#allocation7 + $0x5f8] sm:$0xff]
    %v253 = vld [vmem:[#allocation7 + $0x600] sm:$0xff]
    %v254 = vld [vmem:[#allocation7 + $0x608] sm:$0xff]
    %v255 = vld [vmem:[#allocation7 + $0x610] sm:$0xff]
    %v256 = vld [vmem:[#allocation7 + $0x618] sm:$0xff]
    %v257 = vld [vmem:[#allocation7 + $0x620] sm:$0xff]
    %v258 = vld [vmem:[#allocation7 + $0x628] sm:$0xff]
    %v259 = vld [vmem:[#allocation7 + $0x630] sm:$0xff]
    %v260 = vld [vmem:[#allocation7 + $0x638] sm:$0xff]
    %v261 = vld [vmem:[#allocation7 + $0x640] sm:$0xff]
    %v262 = vld [vmem:[#allocation7 + $0x648] sm:$0xff]
    %v263 = vld [vmem:[#allocation7 + $0x650] sm:$0xff]
    %v264 = vld [vmem:[#allocation7 + $0x658] sm:$0xff]
    %v265 = vld [vmem:[#allocation7 + $0x660] sm:$0xff]
    %v266 = vld [vmem:[#allocation7 + $0x668] sm:$0xff]
    %v267 = vld [vmem:[#allocation7 + $0x670] sm:$0xff]
    %v268 = vld [vmem:[#allocation7 + $0x678] sm:$0xff]
    %v269 = vld [vmem:[#allocation7 + $0x680] sm:$0xff]
    %v270 = vld [vmem:[#allocation7 + $0x688] sm:$0xff]
    %v271 = vld [vmem:[#allocation7 + $0x690] sm:$0xff]
    %v272 = vld [vmem:[#allocation7 + $0x698] sm:$0xff]
    %v273 = vld [vmem:[#allocation7 + $0x6a0] sm:$0xff]
    %v274 = vld [vmem:[#allocation7 + $0x6a8] sm:$0xff]
    %v275 = vld [vmem:[#allocation7 + $0x6b0] sm:$0xff]
    %v276 = vld [vmem:[#allocation7 + $0x6b8] sm:$0xff]
    %v277 = vld [vmem:[#allocation7 + $0x6c0] sm:$0xff]
    %v278 = vld [vmem:[#allocation7 + $0x6c8] sm:$0xff]
    %v279 = vld [vmem:[#allocation7 + $0x6d0] sm:$0xff]
    %v280 = vld [vmem:[#allocation7 + $0x6d8] sm:$0xff]
    %v281 = vld [vmem:[#allocation7 + $0x6e0] sm:$0xff]
    %v282 = vld [vmem:[#allocation7 + $0x6e8] sm:$0xff]
    %v283 = vld [vmem:[#allocation7 + $0x6f0] sm:$0xff]
    %v284 = vld [vmem:[#allocation7 + $0x6f8] sm:$0xff]
    %v285 = vld [vmem:[#allocation7 + $0x700] sm:$0xff]
    %v286 = vld [vmem:[#allocation7 + $0x708] sm:$0xff]
    %v287 = vld [vmem:[#allocation7 + $0x710] sm:$0xff]
    %v288 = vld [vmem:[#allocation7 + $0x718] sm:$0xff]
    %v289 = vld [vmem:[#allocation7 + $0x720] sm:$0xff]
    %v290 = vld [vmem:[#allocation7 + $0x728] sm:$0xff]
    %v291 = vld [vmem:[#allocation7 + $0x730] sm:$0xff]
    %v292 = vld [vmem:[#allocation7 + $0x738] sm:$0xff]
    %v293 = vld [vmem:[#allocation7 + $0x740] sm:$0xff]
    %v294 = vld [vmem:[#allocation7 + $0x748] sm:$0xff]
    %v295 = vld [vmem:[#allocation7 + $0x750] sm:$0xff]
    %v296 = vld [vmem:[#allocation7 + $0x758] sm:$0xff]
    %v297 = vld [vmem:[#allocation7 + $0x760] sm:$0xff]
    %v298 = vld [vmem:[#allocation7 + $0x768] sm:$0xff]
    %v299 = vld [vmem:[#allocation7 + $0x770] sm:$0xff]
    %v300 = vld [vmem:[#allocation7 + $0x778] sm:$0xff]
    %v301 = vld [vmem:[#allocation7 + $0x780] sm:$0xff]
    %v302 = vld [vmem:[#allocation7 + $0x788] sm:$0xff]
    %v303 = vld [vmem:[#allocation7 + $0x790] sm:$0xff]
    %v304 = vld [vmem:[#allocation7 + $0x798] sm:$0xff]
    %v305 = vld [vmem:[#allocation7 + $0x7a0] sm:$0xff]
    %v306 = vld [vmem:[#allocation7 + $0x7a8] sm:$0xff]
    %v307 = vld [vmem:[#allocation7 + $0x7b0] sm:$0xff]
    %v308 = vld [vmem:[#allocation7 + $0x7b8] sm:$0xff]
    %v309 = vld [vmem:[#allocation7 + $0x7c0] sm:$0xff]
    %v310 = vld [vmem:[#allocation7 + $0x7c8] sm:$0xff]
    %v311 = vld [vmem:[#allocation7 + $0x7d0] sm:$0xff]
    %v312 = vld [vmem:[#allocation7 + $0x7d8] sm:$0xff]
    %v313 = vld [vmem:[#allocation7 + $0x7e0] sm:$0xff]
    %v314 = vld [vmem:[#allocation7 + $0x7e8] sm:$0xff]
    %v315 = vld [vmem:[#allocation7 + $0x7f0] sm:$0xff]
    %v316 = vld [vmem:[#allocation7 + $0x7f8] sm:$0xff]
    %317 = vmatprep.subr.mxu0 %v62
    %318 = vmatpush1.msra.mxu0 %v61
    %319 = vmatprep.subr.mxu0 %v70
    %320 = vmatpush1.msra.mxu0 %v69
    %321 = vmatprep.subr.mxu0 %v78
    %322 = vmatpush1.msra.mxu0 %v77
    %323 = vmatprep.subr.mxu0 %v86
    %324 = vmatpush1.msra.mxu0 %v85
    %325 = vmatprep.subr.mxu0 %v94
    %326 = vmatpush1.msra.mxu0 %v93
    %327 = vmatprep.subr.mxu0 %v102
    %328 = vmatpush1.msra.mxu0 %v101
    %329 = vmatprep.subr.mxu0 %v110
    %330 = vmatpush1.msra.mxu0 %v109
    %331 = vmatprep.subr.mxu0 %v118
    %332 = vmatpush1.msra.mxu0 %v117
    %333 = vmatprep.subr.mxu0 %v126
    %334 = vmatpush1.msra.mxu0 %v125
    %335 = vmatprep.subr.mxu0 %v134
    %336 = vmatpush1.msra.mxu0 %v133
    %337 = vmatprep.subr.mxu0 %v142
    %338 = vmatpush1.msra.mxu0 %v141
    %339 = vmatprep.subr.mxu0 %v150
    %340 = vmatpush1.msra.mxu0 %v149
    %341 = vmatprep.subr.mxu0 %v158
    %342 = vmatpush1.msra.mxu0 %v157
    %343 = vmatprep.subr.mxu0 %v166
    %344 = vmatpush1.msra.mxu0 %v165
    %345 = vmatprep.subr.mxu0 %v174
    %346 = vmatpush1.msra.mxu0 %v173
    %347 = vmatprep.subr.mxu0 %v182
    %348 = vmatpush1.msra.mxu0 %v181
    %349 = vmatprep.subr.mxu0 %v190
    %350 = vmatpush1.msra.mxu0 %v189
    %351 = vmatprep.subr.mxu0 %v198
    %352 = vmatpush1.msra.mxu0 %v197
    %353 = vmatprep.subr.mxu0 %v206
    %354 = vmatpush1.msra.mxu0 %v205
    %355 = vmatprep.subr.mxu0 %v214
    %356 = vmatpush1.msra.mxu0 %v213
    %357 = vmatprep.subr.mxu0 %v222
    %358 = vmatpush1.msra.mxu0 %v221
    %359 = vmatprep.subr.mxu0 %v230
    %360 = vmatpush1.msra.mxu0 %v229
    %361 = vmatprep.subr.mxu0 %v238
    %362 = vmatpush1.msra.mxu0 %v237
    %363 = vmatprep.subr.mxu0 %v246
    %364 = vmatpush1.msra.mxu0 %v245
    %365 = vmatprep.subr.mxu0 %v254
    %366 = vmatpush1.msra.mxu0 %v253
    %367 = vmatprep.subr.mxu0 %v262
    %368 = vmatpush1.msra.mxu0 %v261
    %369 = vmatprep.subr.mxu0 %v270
    %370 = vmatpush1.msra.mxu0 %v269
    %371 = vmatprep.subr.mxu0 %v278
    %372 = vmatpush1.msra.mxu0 %v277
    %373 = vmatprep.subr.mxu0 %v286
    %374 = vmatpush1.msra.mxu0 %v285
    %375 = vmatprep.subr.mxu0 %v294
    %376 = vmatpush1.msra.mxu0 %v293
    %377 = vmatprep.subr.mxu0 %v302
    %378 = vmatpush1.msra.mxu0 %v301
    %379 = vmatprep.subr.mxu0 %v310
    %380 = vmatpush1.msra.mxu0 %v309
    %381 = vmatprep.mubr.f32.mxu0 %v60
    %382 = vmatmul.mubr.f32.gmra.mrb[0].mxu0 %v59
    %v383 = vpop.f32.mrb[0].mxu0
    %v384 = vadd.f32 0.0, %v383
    %v385 = vpop.f32.mrb[0].mxu0
    %v386 = vadd.f32 0.0, %v385
    %387 = vmatprep.mubr.f32.mxu0 %v58
    %388 = vmatmul.mubr.f32.gmra.mrb[0].mxu0 %v57
    %v389 = vpop.f32.mrb[0].mxu0
    %v390 = vadd.f32 0.0, %v389
    %v391 = vpop.f32.mrb[0].mxu0
    %v392 = vadd.f32 0.0, %v391
    %393 = vdwg.mxu0
    %394 = vmatprep.subr.mxu0 %v64
    %395 = vmatpush1.msra.mxu0 %v63
    %396 = vmatprep.subr.mxu0 %v72
    %397 = vmatpush1.msra.mxu0 %v71
    %398 = vmatprep.subr.mxu0 %v80
    %399 = vmatpush1.msra.mxu0 %v79
    %400 = vmatprep.subr.mxu0 %v88
    %401 = vmatpush1.msra.mxu0 %v87
    %402 = vmatprep.subr.mxu0 %v96
    %403 = vmatpush1.msra.mxu0 %v95
    %404 = vmatprep.subr.mxu0 %v104
    %405 = vmatpush1.msra.mxu0 %v103
    %406 = vmatprep.subr.mxu0 %v112
    %407 = vmatpush1.msra.mxu0 %v111
    %408 = vmatprep.subr.mxu0 %v120
    %409 = vmatpush1.msra.mxu0 %v119
    %410 = vmatprep.subr.mxu0 %v128
    %411 = vmatpush1.msra.mxu0 %v127
    %412 = vmatprep.subr.mxu0 %v136
    %413 = vmatpush1.msra.mxu0 %v135
    %414 = vmatprep.subr.mxu0 %v144
    %415 = vmatpush1.msra.mxu0 %v143
    %416 = vmatprep.subr.mxu0 %v152
    %417 = vmatpush1.msra.mxu0 %v151
    %418 = vmatprep.subr.mxu0 %v160
    %419 = vmatpush1.msra.mxu0 %v159
    %420 = vmatprep.subr.mxu0 %v168
    %421 = vmatpush1.msra.mxu0 %v167
    %422 = vmatprep.subr.mxu0 %v176
    %423 = vmatpush1.msra.mxu0 %v175
    %424 = vmatprep.subr.mxu0 %v184
    %425 = vmatpush1.msra.mxu0 %v183
    %426 = vmatprep.subr.mxu0 %v192
    %427 = vmatpush1.msra.mxu0 %v191
    %428 = vmatprep.subr.mxu0 %v200
    %429 = vmatpush1.msra.mxu0 %v199
    %430 = vmatprep.subr.mxu0 %v208
    %431 = vmatpush1.msra.mxu0 %v207
    %432 = vmatprep.subr.mxu0 %v216
    %433 = vmatpush1.msra.mxu0 %v215
    %434 = vmatprep.subr.mxu0 %v224
    %435 = vmatpush1.msra.mxu0 %v223
    %436 = vmatprep.subr.mxu0 %v232
    %437 = vmatpush1.msra.mxu0 %v231
    %438 = vmatprep.subr.mxu0 %v240
    %439 = vmatpush1.msra.mxu0 %v239
    %440 = vmatprep.subr.mxu0 %v248
    %441 = vmatpush1.msra.mxu0 %v247
    %442 = vmatprep.subr.mxu0 %v256
    %443 = vmatpush1.msra.mxu0 %v255
    %444 = vmatprep.subr.mxu0 %v264
    %445 = vmatpush1.msra.mxu0 %v263
    %446 = vmatprep.subr.mxu0 %v272
    %447 = vmatpush1.msra.mxu0 %v271
    %448 = vmatprep.subr.mxu0 %v280
    %449 = vmatpush1.msra.mxu0 %v279
    %450 = vmatprep.subr.mxu0 %v288
    %451 = vmatpush1.msra.mxu0 %v287
    %452 = vmatprep.subr.mxu0 %v296
    %453 = vmatpush1.msra.mxu0 %v295
    %454 = vmatprep.subr.mxu0 %v304
    %455 = vmatpush1.msra.mxu0 %v303
    %456 = vmatprep.subr.mxu0 %v312
    %457 = vmatpush1.msra.mxu0 %v311
    %458 = vmatprep.mubr.f32.mxu0 %v60
    %459 = vmatmul.mubr.f32.gmra.mrb[0].mxu0 %v59
    %v460 = vpop.f32.mrb[0].mxu0
    %v461 = vadd.f32 0.0, %v460
    %v462 = vpop.f32.mrb[0].mxu0
    %v463 = vadd.f32 0.0, %v462
    %464 = vmatprep.mubr.f32.mxu0 %v58
    %465 = vmatmul.mubr.f32.gmra.mrb[0].mxu0 %v57
    %v466 = vpop.f32.mrb[0].mxu0
    %v467 = vadd.f32 0.0, %v466
    %v468 = vpop.f32.mrb[0].mxu0
    %v469 = vadd.f32 0.0, %v468
    %470 = vdwg.mxu0
    %471 = vmatprep.subr.mxu0 %v66
    %472 = vmatpush1.msra.mxu0 %v65
    %473 = vmatprep.subr.mxu0 %v74
    %474 = vmatpush1.msra.mxu0 %v73
    %475 = vmatprep.subr.mxu0 %v82
    %476 = vmatpush1.msra.mxu0 %v81
    %477 = vmatprep.subr.mxu0 %v90
    %478 = vmatpush1.msra.mxu0 %v89
    %479 = vmatprep.subr.mxu0 %v98
    %480 = vmatpush1.msra.mxu0 %v97
    %481 = vmatprep.subr.mxu0 %v106
    %482 = vmatpush1.msra.mxu0 %v105
    %483 = vmatprep.subr.mxu0 %v114
    %484 = vmatpush1.msra.mxu0 %v113
    %485 = vmatprep.subr.mxu0 %v122
    %486 = vmatpush1.msra.mxu0 %v121
    %487 = vmatprep.subr.mxu0 %v130
    %488 = vmatpush1.msra.mxu0 %v129
    %489 = vmatprep.subr.mxu0 %v138
    %490 = vmatpush1.msra.mxu0 %v137
    %491 = vmatprep.subr.mxu0 %v146
    %492 = vmatpush1.msra.mxu0 %v145
    %493 = vmatprep.subr.mxu0 %v154
    %494 = vmatpush1.msra.mxu0 %v153
    %495 = vmatprep.subr.mxu0 %v162
    %496 = vmatpush1.msra.mxu0 %v161
    %497 = vmatprep.subr.mxu0 %v170
    %498 = vmatpush1.msra.mxu0 %v169
    %499 = vmatprep.subr.mxu0 %v178
    %500 = vmatpush1.msra.mxu0 %v177
    %501 = vmatprep.subr.mxu0 %v186
    %502 = vmatpush1.msra.mxu0 %v185
    %503 = vmatprep.subr.mxu0 %v194
    %504 = vmatpush1.msra.mxu0 %v193
    %505 = vmatprep.subr.mxu0 %v202
    %506 = vmatpush1.msra.mxu0 %v201
    %507 = vmatprep.subr.mxu0 %v210
    %508 = vmatpush1.msra.mxu0 %v209
    %509 = vmatprep.subr.mxu0 %v218
    %510 = vmatpush1.msra.mxu0 %v217
    %511 = vmatprep.subr.mxu0 %v226
    %512 = vmatpush1.msra.mxu0 %v225
    %513 = vmatprep.subr.mxu0 %v234
    %514 = vmatpush1.msra.mxu0 %v233
    %515 = vmatprep.subr.mxu0 %v242
    %516 = vmatpush1.msra.mxu0 %v241
    %517 = vmatprep.subr.mxu0 %v250
    %518 = vmatpush1.msra.mxu0 %v249
    %519 = vmatprep.subr.mxu0 %v258
    %520 = vmatpush1.msra.mxu0 %v257
    %521 = vmatprep.subr.mxu0 %v266
    %522 = vmatpush1.msra.mxu0 %v265
    %523 = vmatprep.subr.mxu0 %v274
    %524 = vmatpush1.msra.mxu0 %v273
    %525 = vmatprep.subr.mxu0 %v282
    %526 = vmatpush1.msra.mxu0 %v281
    %527 = vmatprep.subr.mxu0 %v290
    %528 = vmatpush1.msra.mxu0 %v289
    %529 = vmatprep.subr.mxu0 %v298
    %530 = vmatpush1.msra.mxu0 %v297
    %531 = vmatprep.subr.mxu0 %v306
    %532 = vmatpush1.msra.mxu0 %v305
    %533 = vmatprep.subr.mxu0 %v314
    %534 = vmatpush1.msra.mxu0 %v313
    %535 = vmatprep.mubr.f32.mxu0 %v60
    %536 = vmatmul.mubr.f32.gmra.mrb[0].mxu0 %v59
    %v537 = vpop.f32.mrb[0].mxu0
    %v538 = vadd.f32 0.0, %v537
    %v539 = vpop.f32.mrb[0].mxu0
    %v540 = vadd.f32 0.0, %v539
    %541 = vmatprep.mubr.f32.mxu0 %v58
    %542 = vmatmul.mubr.f32.gmra.mrb[0].mxu0 %v57
    %v543 = vpop.f32.mrb[0].mxu0
    %v544 = vadd.f32 0.0, %v543
    %v545 = vpop.f32.mrb[0].mxu0
    %v546 = vadd.f32 0.0, %v545
    %547 = vdwg.mxu0
    %548 = vmatprep.subr.mxu0 %v68
    %549 = vmatpush1.msra.mxu0 %v67
    %550 = vmatprep.subr.mxu0 %v76
    %551 = vmatpush1.msra.mxu0 %v75
    %552 = vmatprep.subr.mxu0 %v84
    %553 = vmatpush1.msra.mxu0 %v83
    %554 = vmatprep.subr.mxu0 %v92
    %555 = vmatpush1.msra.mxu0 %v91
    %556 = vmatprep.subr.mxu0 %v100
    %557 = vmatpush1.msra.mxu0 %v99
    %558 = vmatprep.subr.mxu0 %v108
    %559 = vmatpush1.msra.mxu0 %v107
    %560 = vmatprep.subr.mxu0 %v116
    %561 = vmatpush1.msra.mxu0 %v115
    %562 = vmatprep.subr.mxu0 %v124
    %563 = vmatpush1.msra.mxu0 %v123
    %564 = vmatprep.subr.mxu0 %v132
    %565 = vmatpush1.msra.mxu0 %v131
    %566 = vmatprep.subr.mxu0 %v140
    %567 = vmatpush1.msra.mxu0 %v139
    %568 = vmatprep.subr.mxu0 %v148
    %569 = vmatpush1.msra.mxu0 %v147
    %570 = vmatprep.subr.mxu0 %v156
    %571 = vmatpush1.msra.mxu0 %v155
    %572 = vmatprep.subr.mxu0 %v164
    %573 = vmatpush1.msra.mxu0 %v163
    %574 = vmatprep.subr.mxu0 %v172
    %575 = vmatpush1.msra.mxu0 %v171
    %576 = vmatprep.subr.mxu0 %v180
    %577 = vmatpush1.msra.mxu0 %v179
    %578 = vmatprep.subr.mxu0 %v188
    %579 = vmatpush1.msra.mxu0 %v187
    %580 = vmatprep.subr.mxu0 %v196
    %581 = vmatpush1.msra.mxu0 %v195
    %582 = vmatprep.subr.mxu0 %v204
    %583 = vmatpush1.msra.mxu0 %v203
    %584 = vmatprep.subr.mxu0 %v212
    %585 = vmatpush1.msra.mxu0 %v211
    %586 = vmatprep.subr.mxu0 %v220
    %587 = vmatpush1.msra.mxu0 %v219
    %588 = vmatprep.subr.mxu0 %v228
    %589 = vmatpush1.msra.mxu0 %v227
    %590 = vmatprep.subr.mxu0 %v236
    %591 = vmatpush1.msra.mxu0 %v235
    %592 = vmatprep.subr.mxu0 %v244
    %593 = vmatpush1.msra.mxu0 %v243
    %594 = vmatprep.subr.mxu0 %v252
    %595 = vmatpush1.msra.mxu0 %v251
    %596 = vmatprep.subr.mxu0 %v260
    %597 = vmatpush1.msra.mxu0 %v259
    %598 = vmatprep.subr.mxu0 %v268
    %599 = vmatpush1.msra.mxu0 %v267
    %600 = vmatprep.subr.mxu0 %v276
    %601 = vmatpush1.msra.mxu0 %v275
    %602 = vmatprep.subr.mxu0 %v284
    %603 = vmatpush1.msra.mxu0 %v283
    %604 = vmatprep.subr.mxu0 %v292
    %605 = vmatpush1.msra.mxu0 %v291
    %606 = vmatprep.subr.mxu0 %v300
    %607 = vmatpush1.msra.mxu0 %v299
    %608 = vmatprep.subr.mxu0 %v308
    %609 = vmatpush1.msra.mxu0 %v307
    %610 = vmatprep.subr.mxu0 %v316
    %611 = vmatpush1.msra.mxu0 %v315
    %612 = vmatprep.mubr.f32.mxu0 %v60
    %613 = vmatmul.mubr.f32.gmra.mrb[0].mxu0 %v59
    %v614 = vpop.f32.mrb[0].mxu0
    %v615 = vadd.f32 0.0, %v614
    %v616 = vpop.f32.mrb[0].mxu0
    %v617 = vadd.f32 0.0, %v616
    %618 = vmatprep.mubr.f32.mxu0 %v58
    %619 = vmatmul.mubr.f32.gmra.mrb[0].mxu0 %v57
    %v620 = vpop.f32.mrb[0].mxu0
    %v621 = vadd.f32 0.0, %v620
    %v622 = vpop.f32.mrb[0].mxu0
    %v623 = vadd.f32 0.0, %v622
    %624 = vdwg.mxu0
    %v625 = vmax.f32 %v390, 1e-05
    %v626 = vmax.f32 %v392, 1e-05
    %v627 = vmax.f32 %v467, 1e-05
    %v628 = vmax.f32 %v469, 1e-05
    %v629 = vmax.f32 %v544, 1e-05
    %v630 = vmax.f32 %v546, 1e-05
    %v631 = vmax.f32 %v621, 1e-05
    %v632 = vmax.f32 %v623, 1e-05
    %v633 = vrcp.pop %v625
    %v634 = vrcp.pop %v626
    %v635 = vrcp.pop %v627
    %v636 = vrcp.pop %v628
    %v637 = vrcp.pop %v629
    %v638 = vrcp.pop %v630
    %v639 = vrcp.pop %v631
    %v640 = vrcp.pop %v632
    %v641 = vmul.f32 %v384, %v633
    %v642 = vmul.f32 %v386, %v634
    %v643 = vmul.f32 %v461, %v635
    %v644 = vmul.f32 %v463, %v636
    %v645 = vmul.f32 %v538, %v637
    %v646 = vmul.f32 %v540, %v638
    %v647 = vmul.f32 %v615, %v639
    %v648 = vmul.f32 %v617, %v640
    %649 = vst [vmem:[#allocation8] sm:$0xff] %v641
    %650 = vst [vmem:[#allocation8 + $0x8] sm:$0xff] %v642
    %651 = vst [vmem:[#allocation8 + $0x10] sm:$0xff] %v643
    %652 = vst [vmem:[#allocation8 + $0x18] sm:$0xff] %v644
    %653 = vst [vmem:[#allocation8 + $0x20] sm:$0xff] %v645
    %654 = vst [vmem:[#allocation8 + $0x28] sm:$0xff] %v646
    %655 = vst [vmem:[#allocation8 + $0x30] sm:$0xff] %v647
    %656 = vst [vmem:[#allocation8 + $0x38] sm:$0xff] %v648
    %vm657 = vcmp.gt.f32.partialorder %v390, 0.0
    %vm658 = vcmp.gt.f32.partialorder %v392, 0.0
    %vm659 = vcmp.gt.f32.partialorder %v467, 0.0
    %vm660 = vcmp.gt.f32.partialorder %v469, 0.0
    %vm661 = vcmp.gt.f32.partialorder %v544, 0.0
    %vm662 = vcmp.gt.f32.partialorder %v546, 0.0
    %vm663 = vcmp.gt.f32.partialorder %v621, 0.0
    %vm664 = vcmp.gt.f32.partialorder %v623, 0.0
    %v665 = vsel %vm657, 1, 0
    %v666 = vsel %vm658, 1, 0
    %v667 = vsel %vm659, 1, 0
    %v668 = vsel %vm660, 1, 0
    %v669 = vsel %vm661, 1, 0
    %v670 = vsel %vm662, 1, 0
    %v671 = vsel %vm663, 1, 0
    %v672 = vsel %vm664, 1, 0
    %v673 = vcvt.s32.f32 %v665
    %v674 = vcvt.s32.f32 %v666
    %v675 = vcvt.s32.f32 %v667
    %v676 = vcvt.s32.f32 %v668
    %v677 = vcvt.s32.f32 %v669
    %v678 = vcvt.s32.f32 %v670
    %v679 = vcvt.s32.f32 %v671
    %v680 = vcvt.s32.f32 %v672
    %681 = vst [vmem:[#allocation9] sm:$0xff] %v673
    %682 = vst [vmem:[#allocation9 + $0x8] sm:$0xff] %v674
    %683 = vst [vmem:[#allocation9 + $0x10] sm:$0xff] %v675
    %684 = vst [vmem:[#allocation9 + $0x18] sm:$0xff] %v676
    %685 = vst [vmem:[#allocation9 + $0x20] sm:$0xff] %v677
    %686 = vst [vmem:[#allocation9 + $0x28] sm:$0xff] %v678
    %687 = vst [vmem:[#allocation9 + $0x30] sm:$0xff] %v679
    %688 = vst [vmem:[#allocation9 + $0x38] sm:$0xff] %v680
    // Predicated region
    $region26: #{tpu_custom_call.1} parent=1 // pred_check
      _
    $region27: #{tpu_custom_call.1} parent=1 // pred_check_branch
      %690 = sbr.rel (0) target = $region29
    $region28: #{tpu_custom_call.1} parent=1 // pred_region
      %s692 = ssub.s32 1024, 1024
      %693 = vsyncadd [#allocation4], %s692
      %s695 = sshll.u32 [#allocation8], 4
      %s696 = int_to_ptr.vmem [resolvable:$true] %s695
      %698 = dma.vmem_to_hbm [thread:$0]  %s696, 1024, %s3, [#allocation4]
    $region29: #{tpu_custom_call.1} parent=1 // pred_fallthru
      _
    // Predicated region
    $region30: #{tpu_custom_call.1} parent=1 // pred_check
      _
    $region31: #{tpu_custom_call.1} parent=1 // pred_check_branch
      %700 = sbr.rel (0) target = $region33
    $region32: #{tpu_custom_call.1} parent=1 // pred_region
      %s702 = ssub.s32 1024, 1024
      %703 = vsyncadd [#allocation10], %s702
      %s705 = sshll.u32 [#allocation9], 4
      %s706 = int_to_ptr.vmem [resolvable:$true] %s705
      %708 = dma.vmem_to_hbm [thread:$0]  %s706, 1024, %s4, [#allocation10]
    $region33: #{tpu_custom_call.1} parent=1 // pred_fallthru
      _
    // Predicated region
    $region34: #{tpu_custom_call.1} parent=1 // pred_check
      _
    $region35: #{tpu_custom_call.1} parent=1 // pred_check_branch
      %710 = sbr.rel (0) target = $region37
    $region36: #{tpu_custom_call.1} parent=1 // pred_region
      %711 = dma.done [#allocation4], 1024
    $region37: #{tpu_custom_call.1} parent=1 // pred_fallthru
      _
    // Predicated region
    $region38: #{tpu_custom_call.1} parent=1 // pred_check
      _
    $region39: #{tpu_custom_call.1} parent=1 // pred_check_branch
      %713 = sbr.rel (0) target = $region41
    $region40: #{tpu_custom_call.1} parent=1 // pred_region
      %714 = dma.done [#allocation10], 1024
    $region41: #{tpu_custom_call.1} parent=1 // pred_fallthru
      _
    %715 = vsyncpa [#allocation3], 1
    %716 = vsyncpa [#allocation6], 1
    %717 = vsyncpa [#allocation4], 1
    %718 = vsyncpa [#allocation10], 1

</llo_original>
